<compile_context>
chip_gen: v6e
topology: v6e:2x2x1
jax: 0.10.0
libtpu: 0.0.40
codegen_flags: <defaults>
</compile_context>

<pallas_src>
import functools

import jax
import jax.numpy as jnp
from jax.experimental import pallas as pl
from jax.experimental.pallas import tpu as pltpu


def _round_up(v, m):
    return (v + m - 1) // m * m


# ----------------------------------------------------------------------------
# Fused kernel: relu(bn2(fc2(relu(bn1(fc1(x))))))
# ----------------------------------------------------------------------------
def _fused_mlp_kernel(x_ref, w1_ref, b1_ref, g1_ref, bt1_ref,
                      w2_ref, b2_ref, g2_ref, bt2_ref, rmask_ref,
                      o_ref, *, inv_n, eps):
    """All refs are whole (padded, lane-dense) arrays resident in VMEM.

    rmask_ref is [1, Np] with 1.0 for real rows and 0.0 for zero-padded rows;
    BN batch statistics are computed as MXU matmuls against it (single pass).
    """
    rmask = rmask_ref[...]                                              # [1, Np] f32

    def bn_relu(y, g, bt):
        # Single-pass batch statistics on the MXU; padded rows carry zero weight.
        s = jnp.dot(rmask, y, preferred_element_type=jnp.float32)       # [1, C]
        ss = jnp.dot(rmask, y * y, preferred_element_type=jnp.float32)  # [1, C]
        mean = s * inv_n
        var = jnp.maximum(ss * inv_n - mean * mean, 0.0)
        yhat = (y - mean) * jax.lax.rsqrt(var + eps)
        return jnp.maximum(yhat * g + bt, 0.0)

    # fc1: bf16 operands, f32 accumulation on the MXU.
    y1 = jnp.dot(x_ref[...], w1_ref[...],
                 preferred_element_type=jnp.float32) + b1_ref[...]
    h = bn_relu(y1, g1_ref[...], bt1_ref[...])

    # fc2 on the VMEM-resident intermediate (no HBM round trip).
    y2 = jnp.dot(h.astype(jnp.bfloat16), w2_ref[...],
                 preferred_element_type=jnp.float32) + b2_ref[...]
    o_ref[...] = bn_relu(y2, g2_ref[...], bt2_ref[...])


def mlp_forward(x, params, *, eps=1e-5):
    """Fused forward of the pruned MLP block.

    x:      [N, C0] float32
    params: w1 [C0, C1], b1 [C1], g1 [C1], bt1 [C1],
            w2 [C1, C2], b2 [C2], g2 [C2], bt2 [C2]
            (weights stored [in, out] = transposed vs. PyTorch; prune masks
             already folded in).
    returns [N, C2] float32
    """
    n, c0 = x.shape
    c1 = params['w1'].shape[1]
    c2 = params['w2'].shape[1]

    np_ = _round_up(max(n, 8), 8)            # sublane-aligned rows
    c0p = _round_up(c0, 128)                 # lane-dense channels
    c1p = _round_up(c1, 128)
    c2p = _round_up(c2, 128)

    def pad2(a, r, c):
        return jnp.pad(a, ((0, r - a.shape[0]), (0, c - a.shape[1])))

    def pad_row(v, c):
        v = jnp.reshape(v, (1, -1)).astype(jnp.float32)
        return jnp.pad(v, ((0, 0), (0, c - v.shape[1])))

    # bf16 matmul operands (halved DMA bytes, 2x MXU throughput on v6e/v7x);
    # bias / gamma / beta / stats stay f32.
    x_p = pad2(x.astype(jnp.float32), np_, c0p).astype(jnp.bfloat16)
    w1_p = pad2(params['w1'].astype(jnp.float32), c0p, c1p).astype(jnp.bfloat16)
    w2_p = pad2(params['w2'].astype(jnp.float32), c1p, c2p).astype(jnp.bfloat16)
    b1_p, g1_p, bt1_p = (pad_row(params[k], c1p) for k in ('b1', 'g1', 'bt1'))
    b2_p, g2_p, bt2_p = (pad_row(params[k], c2p) for k in ('b2', 'g2', 'bt2'))
    rmask = (jnp.arange(np_) < n).astype(jnp.float32).reshape(1, np_)

    # Explicit scoped-VMEM budget: inputs + output + intermediates + slack.
    footprint = (x_p.size * 2 + w1_p.size * 2 + w2_p.size * 2
                 + (b1_p.size + g1_p.size + bt1_p.size
                    + b2_p.size + g2_p.size + bt2_p.size + rmask.size) * 4
                 + np_ * (c1p + 2 * c2p) * 4)
    vmem_limit = int(min(max(4 * footprint, 16 << 20), 96 << 20))

    kernel = functools.partial(_fused_mlp_kernel, inv_n=1.0 / n, eps=eps)
    out_p = pl.pallas_call(
        kernel,
        out_shape=jax.ShapeDtypeStruct((np_, c2p), jnp.float32),
        compiler_params=pltpu.CompilerParams(vmem_limit_bytes=vmem_limit),
    )(x_p, w1_p, b1_p, g1_p, bt1_p, w2_p, b2_p, g2_p, bt2_p, rmask)

    return out_p[:n, :c2]


# ----------------------------------------------------------------------------
# Pure-JAX reference (same numerics: bf16 matmul operands, f32 BN math)
# ----------------------------------------------------------------------------
def _reference(x, p, *, eps=1e-5):
    def bn_relu(y, g, bt):
        mean = jnp.mean(y, axis=0, keepdims=True)
        var = jnp.mean(jnp.square(y - mean), axis=0, keepdims=True)
        return jnp.maximum((y - mean) * jax.lax.rsqrt(var + eps) * g + bt, 0.0)

    y1 = jnp.dot(x.astype(jnp.bfloat16), p['w1'].astype(jnp.bfloat16),
                 preferred_element_type=jnp.float32) + p['b1'][None, :]
    h = bn_relu(y1, p['g1'][None, :], p['bt1'][None, :])
    y2 = jnp.dot(h.astype(jnp.bfloat16), p['w2'].astype(jnp.bfloat16),
                 preferred_element_type=jnp.float32) + p['b2'][None, :]
    return bn_relu(y2, p['g2'][None, :], p['bt2'][None, :])


# ----------------------------------------------------------------------------
# Deterministic parameter / prune-mask construction
# ----------------------------------------------------------------------------
def _linear_init(key, fan_in, fan_out):
    k1, k2 = jax.random.split(key)
    bound = 1.0 / (fan_in ** 0.5)
    w = jax.random.uniform(k1, (fan_in, fan_out), jnp.float32, -bound, bound)
    b = jax.random.uniform(k2, (fan_out,), jnp.float32, -bound, bound)
    return w, b


def _mask(key, shape, p_keep=0.8):
    return jax.random.bernoulli(key, p_keep, shape).astype(jnp.float32)


def build_params(key, channels):
    c0, c1, c2 = channels
    k1, k2, km1w, km1b, km2w, km2b = jax.random.split(key, 6)
    w1, b1 = _linear_init(k1, c0, c1)
    w2, b2 = _linear_init(k2, c1, c2)
    # Prune masks folded in once (steady-state / force_mask_apply semantics).
    w1 = w1 * _mask(km1w, w1.shape)
    b1 = b1 * _mask(km1b, b1.shape)
    w2 = w2 * _mask(km2w, w2.shape)
    b2 = b2 * _mask(km2b, b2.shape)
    return dict(w1=w1, b1=b1,
                g1=jnp.ones((c1,), jnp.float32), bt1=jnp.zeros((c1,), jnp.float32),
                w2=w2, b2=b2,
                g2=jnp.ones((c2,), jnp.float32), bt2=jnp.zeros((c2,), jnp.float32))


# ----------------------------------------------------------------------------
if __name__ == "__main__":
    key = jax.random.PRNGKey(0)
    k_param, k_x = jax.random.split(key)

    n_rows = 20                   # deliberately not a multiple of 8 (row padding path)
    channels = (32, 64, 32)       # [in, hidden, out]; len(channels) == 3 as in the spec

    x = jax.random.normal(k_x, (n_rows, channels[0]), jnp.float32)
    params = build_params(k_param, channels)

    out = mlp_forward(x, params)
    out = jax.block_until_ready(out)

    ref = _reference(x, params)
    assert out.shape == (n_rows, channels[2])
    assert bool(jnp.all(jnp.isfinite(out)))
    assert bool(jnp.allclose(out, ref, rtol=2e-2, atol=2e-2)), \
        float(jnp.max(jnp.abs(out - ref)))
    print("KERNEL_OK")
</pallas_src>

<mosaic_0001>
module attributes {stable_mosaic.version = 11 : i64} {
  func.func @_fused_mlp_kernel(%arg0: memref<24x128xbf16, #tpu.memory_space<vmem>>, %arg1: memref<128x128xbf16, #tpu.memory_space<vmem>>, %arg2: memref<1x128xf32, #tpu.memory_space<vmem>>, %arg3: memref<1x128xf32, #tpu.memory_space<vmem>>, %arg4: memref<1x128xf32, #tpu.memory_space<vmem>>, %arg5: memref<128x128xbf16, #tpu.memory_space<vmem>>, %arg6: memref<1x128xf32, #tpu.memory_space<vmem>>, %arg7: memref<1x128xf32, #tpu.memory_space<vmem>>, %arg8: memref<1x128xf32, #tpu.memory_space<vmem>>, %arg9: memref<1x24xf32, #tpu.memory_space<vmem>>, %arg10: memref<24x128xf32, #tpu.memory_space<vmem>>) attributes {dimension_semantics = [], scalar_prefetch = 0 : i64, scratch_operands = 0 : i64, tpu.core_type = #tpu.core_type<tc>} {
    %c0 = arith.constant 0 : index
    %c0_0 = arith.constant 0 : index
    %0 = vector.load %arg9[%c0, %c0_0] : memref<1x24xf32, #tpu.memory_space<vmem>>, vector<1x24xf32>
    %c0_1 = arith.constant 0 : index
    %c0_2 = arith.constant 0 : index
    %1 = vector.load %arg0[%c0_1, %c0_2] : memref<24x128xbf16, #tpu.memory_space<vmem>>, vector<24x128xbf16>
    %c0_3 = arith.constant 0 : index
    %c0_4 = arith.constant 0 : index
    %2 = vector.load %arg1[%c0_3, %c0_4] : memref<128x128xbf16, #tpu.memory_space<vmem>>, vector<128x128xbf16>
    %cst = arith.constant dense<0.000000e+00> : vector<24x128xf32>
    %3 = tpu.matmul %1, %2, %cst {dimension_numbers = #tpu.dot_dimension_numbers<[1], [0], [0], [1], [0, 0, 1, 1], [], []>} : vector<24x128xbf16>, vector<128x128xbf16>, vector<24x128xf32> -> vector<24x128xf32>
    %c0_5 = arith.constant 0 : index
    %c0_6 = arith.constant 0 : index
    %4 = vector.load %arg2[%c0_5, %c0_6] : memref<1x128xf32, #tpu.memory_space<vmem>>, vector<1x128xf32>
    %5 = vector.broadcast %4 : vector<1x128xf32> to vector<24x128xf32>
    %6 = arith.addf %3, %5 : vector<24x128xf32>
    %c0_7 = arith.constant 0 : index
    %c0_8 = arith.constant 0 : index
    %7 = vector.load %arg3[%c0_7, %c0_8] : memref<1x128xf32, #tpu.memory_space<vmem>>, vector<1x128xf32>
    %c0_9 = arith.constant 0 : index
    %c0_10 = arith.constant 0 : index
    %8 = vector.load %arg4[%c0_9, %c0_10] : memref<1x128xf32, #tpu.memory_space<vmem>>, vector<1x128xf32>
    %cst_11 = arith.constant dense<0.000000e+00> : vector<1x128xf32>
    %9 = tpu.matmul %0, %6, %cst_11 {dimension_numbers = #tpu.dot_dimension_numbers<[1], [0], [0], [1], [0, 0, 1, 1], [], []>} : vector<1x24xf32>, vector<24x128xf32>, vector<1x128xf32> -> vector<1x128xf32>
    %10 = arith.mulf %6, %6 : vector<24x128xf32>
    %cst_12 = arith.constant dense<0.000000e+00> : vector<1x128xf32>
    %11 = tpu.matmul %0, %10, %cst_12 {dimension_numbers = #tpu.dot_dimension_numbers<[1], [0], [0], [1], [0, 0, 1, 1], [], []>} : vector<1x24xf32>, vector<24x128xf32>, vector<1x128xf32> -> vector<1x128xf32>
    %cst_13 = arith.constant 5.000000e-02 : f32
    %12 = vector.broadcast %cst_13 : f32 to vector<1x128xf32>
    %13 = arith.mulf %9, %12 : vector<1x128xf32>
    %cst_14 = arith.constant 5.000000e-02 : f32
    %14 = vector.broadcast %cst_14 : f32 to vector<1x128xf32>
    %15 = arith.mulf %11, %14 : vector<1x128xf32>
    %16 = arith.mulf %13, %13 : vector<1x128xf32>
    %17 = arith.subf %15, %16 : vector<1x128xf32>
    %cst_15 = arith.constant 0.000000e+00 : f32
    %18 = vector.broadcast %cst_15 : f32 to vector<1x128xf32>
    %19 = arith.maximumf %17, %18 : vector<1x128xf32>
    %20 = vector.broadcast %13 : vector<1x128xf32> to vector<24x128xf32>
    %21 = arith.subf %6, %20 : vector<24x128xf32>
    %cst_16 = arith.constant 9.99999974E-6 : f32
    %22 = vector.broadcast %cst_16 : f32 to vector<1x128xf32>
    %23 = arith.addf %19, %22 : vector<1x128xf32>
    %24 = math.rsqrt %23 : vector<1x128xf32>
    %25 = vector.broadcast %24 : vector<1x128xf32> to vector<24x128xf32>
    %26 = arith.mulf %21, %25 : vector<24x128xf32>
    %27 = vector.broadcast %7 : vector<1x128xf32> to vector<24x128xf32>
    %28 = arith.mulf %26, %27 : vector<24x128xf32>
    %29 = vector.broadcast %8 : vector<1x128xf32> to vector<24x128xf32>
    %30 = arith.addf %28, %29 : vector<24x128xf32>
    %cst_17 = arith.constant 0.000000e+00 : f32
    %31 = vector.broadcast %cst_17 : f32 to vector<24x128xf32>
    %32 = arith.maximumf %30, %31 : vector<24x128xf32>
    %33 = arith.truncf %32 : vector<24x128xf32> to vector<24x128xbf16>
    %c0_18 = arith.constant 0 : index
    %c0_19 = arith.constant 0 : index
    %34 = vector.load %arg5[%c0_18, %c0_19] : memref<128x128xbf16, #tpu.memory_space<vmem>>, vector<128x128xbf16>
    %cst_20 = arith.constant dense<0.000000e+00> : vector<24x128xf32>
    %35 = tpu.matmul %33, %34, %cst_20 {dimension_numbers = #tpu.dot_dimension_numbers<[1], [0], [0], [1], [0, 0, 1, 1], [], []>} : vector<24x128xbf16>, vector<128x128xbf16>, vector<24x128xf32> -> vector<24x128xf32>
    %c0_21 = arith.constant 0 : index
    %c0_22 = arith.constant 0 : index
    %36 = vector.load %arg6[%c0_21, %c0_22] : memref<1x128xf32, #tpu.memory_space<vmem>>, vector<1x128xf32>
    %37 = vector.broadcast %36 : vector<1x128xf32> to vector<24x128xf32>
    %38 = arith.addf %35, %37 : vector<24x128xf32>
    %c0_23 = arith.constant 0 : index
    %c0_24 = arith.constant 0 : index
    %39 = vector.load %arg7[%c0_23, %c0_24] : memref<1x128xf32, #tpu.memory_space<vmem>>, vector<1x128xf32>
    %c0_25 = arith.constant 0 : index
    %c0_26 = arith.constant 0 : index
    %40 = vector.load %arg8[%c0_25, %c0_26] : memref<1x128xf32, #tpu.memory_space<vmem>>, vector<1x128xf32>
    %cst_27 = arith.constant dense<0.000000e+00> : vector<1x128xf32>
    %41 = tpu.matmul %0, %38, %cst_27 {dimension_numbers = #tpu.dot_dimension_numbers<[1], [0], [0], [1], [0, 0, 1, 1], [], []>} : vector<1x24xf32>, vector<24x128xf32>, vector<1x128xf32> -> vector<1x128xf32>
    %42 = arith.mulf %38, %38 : vector<24x128xf32>
    %cst_28 = arith.constant dense<0.000000e+00> : vector<1x128xf32>
    %43 = tpu.matmul %0, %42, %cst_28 {dimension_numbers = #tpu.dot_dimension_numbers<[1], [0], [0], [1], [0, 0, 1, 1], [], []>} : vector<1x24xf32>, vector<24x128xf32>, vector<1x128xf32> -> vector<1x128xf32>
    %cst_29 = arith.constant 5.000000e-02 : f32
    %44 = vector.broadcast %cst_29 : f32 to vector<1x128xf32>
    %45 = arith.mulf %41, %44 : vector<1x128xf32>
    %cst_30 = arith.constant 5.000000e-02 : f32
    %46 = vector.broadcast %cst_30 : f32 to vector<1x128xf32>
    %47 = arith.mulf %43, %46 : vector<1x128xf32>
    %48 = arith.mulf %45, %45 : vector<1x128xf32>
    %49 = arith.subf %47, %48 : vector<1x128xf32>
    %cst_31 = arith.constant 0.000000e+00 : f32
    %50 = vector.broadcast %cst_31 : f32 to vector<1x128xf32>
    %51 = arith.maximumf %49, %50 : vector<1x128xf32>
    %52 = vector.broadcast %45 : vector<1x128xf32> to vector<24x128xf32>
    %53 = arith.subf %38, %52 : vector<24x128xf32>
    %cst_32 = arith.constant 9.99999974E-6 : f32
    %54 = vector.broadcast %cst_32 : f32 to vector<1x128xf32>
    %55 = arith.addf %51, %54 : vector<1x128xf32>
    %56 = math.rsqrt %55 : vector<1x128xf32>
    %57 = vector.broadcast %56 : vector<1x128xf32> to vector<24x128xf32>
    %58 = arith.mulf %53, %57 : vector<24x128xf32>
    %59 = vector.broadcast %39 : vector<1x128xf32> to vector<24x128xf32>
    %60 = arith.mulf %58, %59 : vector<24x128xf32>
    %61 = vector.broadcast %40 : vector<1x128xf32> to vector<24x128xf32>
    %62 = arith.addf %60, %61 : vector<24x128xf32>
    %cst_33 = arith.constant 0.000000e+00 : f32
    %63 = vector.broadcast %cst_33 : f32 to vector<24x128xf32>
    %64 = arith.maximumf %62, %63 : vector<24x128xf32>
    %c0_34 = arith.constant 0 : index
    %c0_35 = arith.constant 0 : index
    %65 = vector.load %arg10[%c0_34, %c0_35] : memref<24x128xf32, #tpu.memory_space<vmem>>, vector<24x128xf32>
    tpu.vector_store %arg10[%c0_34, %c0_35], %64 {strides = array<i32>} : memref<24x128xf32, #tpu.memory_space<vmem>>, vector<24x128xf32>,
    return
  }
}

</mosaic_0001>

<llo_original>
// kernel: tpu_custom_call.1
$region0: #{tpu_custom_call.1}
  #allocation0 [shape = 'u32[]', space=smem, size = 0x4, offset = 0x4, fixed_abs, tag = 'smem constant byte address 0x4 - core index']
  #allocation1 [shape = 'u32[144,128]{1,0:T(1,128)}', space=vmem, size = 0x12000, scoped, tag = 'internal scratch']
  %s0 = inlined_call_operand.hbm [shape: bf16[24,128], index: 0, kind: input, shape index: {}]
  %s1 = inlined_call_operand.hbm [shape: bf16[128,128], index: 1, kind: input, shape index: {}]
  %s2 = inlined_call_operand.vmem [shape: f32[1,128], index: 2, kind: input, shape index: {}]
  %s3 = inlined_call_operand.vmem [shape: f32[1,128], index: 3, kind: input, shape index: {}]
  %s4 = inlined_call_operand.vmem [shape: f32[1,128], index: 4, kind: input, shape index: {}]
  %s5 = inlined_call_operand.hbm [shape: bf16[128,128], index: 5, kind: input, shape index: {}]
  %s6 = inlined_call_operand.vmem [shape: f32[1,128], index: 6, kind: input, shape index: {}]
  %s7 = inlined_call_operand.vmem [shape: f32[1,128], index: 7, kind: input, shape index: {}]
  %s8 = inlined_call_operand.vmem [shape: f32[1,128], index: 8, kind: input, shape index: {}]
  %s9 = inlined_call_operand.vmem [shape: f32[1,24], index: 9, kind: input, shape index: {}]
  %s10 = inlined_call_operand.hbm [shape: f32[24,128], index: 10, kind: output, shape index: {}]
  %s11 = sld [smem:[#allocation0]]
  $region62: #{tpu_custom_call.1} parent=0
    _
  %s13 = ssub.s32 1, %s11
  %s14 = scalar_select 0, %s13, %s11
  $region1: #{tpu_custom_call.1} parent=0
    #allocation2 [shape = 'u8[6144]{0}', space=vmem, size = 0x1800, scoped, tag = 'input window, operand 0, single buffered']
    #allocation3 [shape = 's32[1]{0}', space=sflag, size = 0x4, scoped, tag = 'scoped memory for tpu_custom_call.1']
    #allocation4 [shape = 's32[1]{0}', space=sflag, size = 0x4, scoped, tag = 'scoped memory for tpu_custom_call.1']
    #allocation5 [shape = 'u8[32768]{0}', space=vmem, size = 0x8000, scoped, tag = 'input window, operand 1, single buffered']
    #allocation6 [shape = 's32[1]{0}', space=sflag, size = 0x4, scoped, tag = 'scoped memory for tpu_custom_call.1']
    #allocation7 [shape = 'u8[32768]{0}', space=vmem, size = 0x8000, scoped, tag = 'input window, operand 5, single buffered']
    #allocation8 [shape = 'u8[12288]{0}', space=vmem, size = 0x3000, scoped, tag = 'output window, operand 0, single buffered']
    %15 = vsyncpa [#allocation3], 0
    %16 = vsyncpa [#allocation6], 0
    %17 = vsyncpa [#allocation4], 0
    // Predicated region
    $region2: #{tpu_custom_call.1} parent=1 // pred_check
      _
    $region3: #{tpu_custom_call.1} parent=1 // pred_check_branch
      %19 = sbr.rel (0) target = $region5
    $region4: #{tpu_custom_call.1} parent=1 // pred_region
      %s21 = ssub.s32 192, 192
      %22 = vsyncadd [#allocation3], %s21
      %s23 = sshll.u32 [#allocation2], 4
      %s24 = int_to_ptr.vmem [resolvable:$true] %s23
      %29 = dma.hbm_to_vmem [thread:$0]  %s0, 192, %s24, [#allocation3], 64, 64, 4
    $region5: #{tpu_custom_call.1} parent=1 // pred_fallthru
      _
    // Predicated region
    $region6: #{tpu_custom_call.1} parent=1 // pred_check
      _
    $region7: #{tpu_custom_call.1} parent=1 // pred_check_branch
      %31 = sbr.rel (0) target = $region9
    $region8: #{tpu_custom_call.1} parent=1 // pred_region
      %s33 = ssub.s32 1024, 1024
      %34 = vsyncadd [#allocation6], %s33
      %s35 = sshll.u32 [#allocation5], 4
      %s36 = int_to_ptr.vmem [resolvable:$true] %s35
      %41 = dma.hbm_to_vmem [thread:$0]  %s1, 1024, %s36, [#allocation6], 64, 64, 4
    $region9: #{tpu_custom_call.1} parent=1 // pred_fallthru
      _
    // Predicated region
    $region10: #{tpu_custom_call.1} parent=1 // pred_check
      _
    $region11: #{tpu_custom_call.1} parent=1 // pred_check_branch
      %43 = sbr.rel (0) target = $region13
    $region12: #{tpu_custom_call.1} parent=1 // pred_region
      _
    $region13: #{tpu_custom_call.1} parent=1 // pred_fallthru
      _
    // Predicated region
    $region14: #{tpu_custom_call.1} parent=1 // pred_check
      _
    $region15: #{tpu_custom_call.1} parent=1 // pred_check_branch
      %45 = sbr.rel (0) target = $region17
    $region16: #{tpu_custom_call.1} parent=1 // pred_region
      _
    $region17: #{tpu_custom_call.1} parent=1 // pred_fallthru
      _
    // Predicated region
    $region18: #{tpu_custom_call.1} parent=1 // pred_check
      _
    $region19: #{tpu_custom_call.1} parent=1 // pred_check_branch
      %47 = sbr.rel (0) target = $region21
    $region20: #{tpu_custom_call.1} parent=1 // pred_region
      _
    $region21: #{tpu_custom_call.1} parent=1 // pred_fallthru
      _
    // Predicated region
    $region22: #{tpu_custom_call.1} parent=1 // pred_check
      _
    $region23: #{tpu_custom_call.1} parent=1 // pred_check_branch
      %49 = sbr.rel (0) target = $region25
    $region24: #{tpu_custom_call.1} parent=1 // pred_region
      %s51 = ssub.s32 1024, 1024
      %52 = vsyncadd [#allocation6], %s51
      %s53 = sshll.u32 [#allocation7], 4
      %s54 = int_to_ptr.vmem [resolvable:$true] %s53
      %59 = dma.hbm_to_vmem [thread:$0]  %s5, 1024, %s54, [#allocation6], 64, 64, 4
    $region25: #{tpu_custom_call.1} parent=1 // pred_fallthru
      _
    // Predicated region
    $region26: #{tpu_custom_call.1} parent=1 // pred_check
      _
    $region27: #{tpu_custom_call.1} parent=1 // pred_check_branch
      %61 = sbr.rel (0) target = $region29
    $region28: #{tpu_custom_call.1} parent=1 // pred_region
      _
    $region29: #{tpu_custom_call.1} parent=1 // pred_fallthru
      _
    // Predicated region
    $region30: #{tpu_custom_call.1} parent=1 // pred_check
      _
    $region31: #{tpu_custom_call.1} parent=1 // pred_check_branch
      %63 = sbr.rel (0) target = $region33
    $region32: #{tpu_custom_call.1} parent=1 // pred_region
      _
    $region33: #{tpu_custom_call.1} parent=1 // pred_fallthru
      _
    // Predicated region
    $region34: #{tpu_custom_call.1} parent=1 // pred_check
      _
    $region35: #{tpu_custom_call.1} parent=1 // pred_check_branch
      %65 = sbr.rel (0) target = $region37
    $region36: #{tpu_custom_call.1} parent=1 // pred_region
      _
    $region37: #{tpu_custom_call.1} parent=1 // pred_fallthru
      _
    // Predicated region
    $region38: #{tpu_custom_call.1} parent=1 // pred_check
      _
    $region39: #{tpu_custom_call.1} parent=1 // pred_check_branch
      %67 = sbr.rel (0) target = $region41
    $region40: #{tpu_custom_call.1} parent=1 // pred_region
      _
    $region41: #{tpu_custom_call.1} parent=1 // pred_fallthru
      _
    // Predicated region
    $region42: #{tpu_custom_call.1} parent=1 // pred_check
      _
    $region43: #{tpu_custom_call.1} parent=1 // pred_check_branch
      %69 = sbr.rel (0) target = $region45
    $region44: #{tpu_custom_call.1} parent=1 // pred_region
      %70 = dma.done [#allocation3], 192
    $region45: #{tpu_custom_call.1} parent=1 // pred_fallthru
      _
    // Predicated region
    $region46: #{tpu_custom_call.1} parent=1 // pred_check
      _
    $region47: #{tpu_custom_call.1} parent=1 // pred_check_branch
      %72 = sbr.rel (0) target = $region49
    $region48: #{tpu_custom_call.1} parent=1 // pred_region
      %73 = dma.done [#allocation6], 1024
    $region49: #{tpu_custom_call.1} parent=1 // pred_fallthru
      _
    // Predicated region
    $region50: #{tpu_custom_call.1} parent=1 // pred_check
      _
    $region51: #{tpu_custom_call.1} parent=1 // pred_check_branch
      %75 = sbr.rel (0) target = $region53
    $region52: #{tpu_custom_call.1} parent=1 // pred_region
      %76 = dma.done [#allocation6], 1024
    $region53: #{tpu_custom_call.1} parent=1 // pred_fallthru
      _
    %v78 = vld [vmem:[%s9] sm:$0x1]
    %v79 = vld [vmem:[#allocation2] sm:$0xf]
    %v80 = vld [vmem:[#allocation2 + $0x4] sm:$0xf]
    %v81 = vld [vmem:[#allocation2 + $0x8] sm:$0xf]
    %v82 = vld [vmem:[#allocation5] sm:$0xf]
    %v83 = vld [vmem:[#allocation5 + $0x4] sm:$0xf]
    %v84 = vld [vmem:[#allocation5 + $0x8] sm:$0xf]
    %v85 = vld [vmem:[#allocation5 + $0xc] sm:$0xf]
    %v86 = vld [vmem:[#allocation5 + $0x10] sm:$0xf]
    %v87 = vld [vmem:[#allocation5 + $0x14] sm:$0xf]
    %v88 = vld [vmem:[#allocation5 + $0x18] sm:$0xf]
    %v89 = vld [vmem:[#allocation5 + $0x1c] sm:$0xf]
    %v90 = vld [vmem:[#allocation5 + $0x20] sm:$0xf]
    %v91 = vld [vmem:[#allocation5 + $0x24] sm:$0xf]
    %v92 = vld [vmem:[#allocation5 + $0x28] sm:$0xf]
    %v93 = vld [vmem:[#allocation5 + $0x2c] sm:$0xf]
    %v94 = vld [vmem:[#allocation5 + $0x30] sm:$0xf]
    %v95 = vld [vmem:[#allocation5 + $0x34] sm:$0xf]
    %v96 = vld [vmem:[#allocation5 + $0x38] sm:$0xf]
    %v97 = vld [vmem:[#allocation5 + $0x3c] sm:$0xf]
    %v98 = vld [vmem:[%s2] sm:$0x1]
    %v100 = vlaneseq
    %v101 = vshrl.u32 %v100, 7
    %v102 = vsub.s32 0, %v101
    %v103 = vrot.slane %v98, %v102
    %v108 = vunpack.c.l.b16 %v79
    %v109 = vunpack.c.l.b16 %v80
    %v110 = vunpack.c.l.b16 %v81
    %v111 = vpack.c.b16 %v109, %v108
    %v112 = vpack.c.b16 %v110, %v110
    %v131 = vunpack.c.l.b16 %v82
    %v132 = vunpack.c.l.b16 %v83
    %v133 = vunpack.c.l.b16 %v84
    %v134 = vunpack.c.l.b16 %v85
    %v135 = vunpack.c.l.b16 %v86
    %v136 = vunpack.c.l.b16 %v87
    %v137 = vunpack.c.l.b16 %v88
    %v138 = vunpack.c.l.b16 %v89
    %v139 = vunpack.c.l.b16 %v90
    %v140 = vunpack.c.l.b16 %v91
    %v141 = vunpack.c.l.b16 %v92
    %v142 = vunpack.c.l.b16 %v93
    %v143 = vunpack.c.l.b16 %v94
    %v144 = vunpack.c.l.b16 %v95
    %v145 = vunpack.c.l.b16 %v96
    %v146 = vunpack.c.l.b16 %v97
    %v147 = vpack.c.b16 %v132, %v131
    %v148 = vpack.c.b16 %v134, %v133
    %v149 = vpack.c.b16 %v136, %v135
    %v150 = vpack.c.b16 %v138, %v137
    %v151 = vpack.c.b16 %v140, %v139
    %v152 = vpack.c.b16 %v142, %v141
    %v153 = vpack.c.b16 %v144, %v143
    %v154 = vpack.c.b16 %v146, %v145
    %163 = vmatprep.subr.bf16.mxu0 0
    %164 = vmatpush1.bf16.msra.mxu0 %v154
    %165 = vmatprep.subr.bf16.mxu0 0
    %166 = vmatpush1.bf16.msra.mxu0 %v153
    %167 = vmatprep.subr.bf16.mxu0 0
    %168 = vmatpush1.bf16.msra.mxu0 %v152
    %169 = vmatprep.subr.bf16.mxu0 0
    %170 = vmatpush1.bf16.msra.mxu0 %v151
    %171 = vmatprep.subr.bf16.mxu0 0
    %172 = vmatpush1.bf16.msra.mxu0 %v150
    %173 = vmatprep.subr.bf16.mxu0 0
    %174 = vmatpush1.bf16.msra.mxu0 %v149
    %175 = vmatprep.subr.bf16.mxu0 0
    %176 = vmatpush1.bf16.msra.mxu0 %v148
    %177 = vmatprep.subr.bf16.mxu0 0
    %178 = vmatpush1.bf16.msra.mxu0 %v147
    %179 = vmatprep.subr.bf16.mxu0 0
    %180 = vmatpush2.bf16.msra.mxu0 0
    %181 = vmatprep.subr.bf16.mxu0 0
    %182 = vmatpush2.bf16.msra.mxu0 0
    %183 = vmatprep.subr.bf16.mxu0 0
    %184 = vmatpush2.bf16.msra.mxu0 0
    %185 = vmatprep.subr.bf16.mxu0 0
    %186 = vmatpush2.bf16.msra.mxu0 0
    %187 = vmatprep.subr.bf16.mxu0 0
    %188 = vmatpush2.bf16.msra.mxu0 0
    %189 = vmatprep.subr.bf16.mxu0 0
    %190 = vmatpush2.bf16.msra.mxu0 0
    %191 = vmatprep.subr.bf16.mxu0 0
    %192 = vmatpush2.bf16.msra.mxu0 0
    %193 = vmatprep.subr.bf16.mxu0 0
    %194 = vmatpush2.bf16.msra.mxu0 0
    %195 = vmatprep.mubr.bf16.mxu0 0
    %196 = vmatmul.mubr.bf16.gmra.mxu0 %v111
    %v197 = vpop.f32.mrf.mxu0
    %v198 = vadd.f32 %v103, %v197
    %v199 = vpop.f32.mrf.mxu0
    %v200 = vpop.f32.mrf.mxu0
    %v201 = vadd.f32 %v103, %v200
    %v202 = vpop.f32.mrf.mxu0
    %203 = vmatprep.mubr.bf16.mxu0 0
    %204 = vmatmul.mubr.bf16.gmra.mxu0 %v112
    %v205 = vpop.f32.mrf.mxu0
    %v206 = vadd.f32 %v103, %v205
    %v207 = vpop.f32.mrf.mxu0
    %v208 = vpop.f32.mrf.mxu0
    %v209 = vpop.f32.mrf.mxu0
    %210 = vdwg.mxu0
    %v211 = vld [vmem:[%s3] sm:$0x1]
    %v212 = vld [vmem:[%s4] sm:$0x1]
    %vm213 = vcmask 195584
    %v215 = vsel %vm213, %v78, 0
    %217 = vmatprep.subr.mxu0 0.0
    %218 = vmatpush1.msra.mxu0 0.0
    %219 = vmatprep.subr.mxu0 0.0
    %220 = vmatpush1.msra.mxu0 0.0
    %221 = vmatprep.subr.mxu0 0.0
    %222 = vmatpush1.msra.mxu0 0.0
    %223 = vmatprep.subr.mxu0 0.0
    %224 = vmatpush1.msra.mxu0 0.0
    %225 = vmatprep.subr.mxu0 0.0
    %226 = vmatpush1.msra.mxu0 0.0
    %227 = vmatprep.subr.mxu0 0.0
    %228 = vmatpush1.msra.mxu0 0.0
    %229 = vmatprep.subr.mxu0 0.0
    %230 = vmatpush1.msra.mxu0 0.0
    %231 = vmatprep.subr.mxu0 0.0
    %232 = vmatpush1.msra.mxu0 0.0
    %233 = vmatprep.subr.mxu0 0.0
    %234 = vmatpush1.msra.mxu0 0.0
    %235 = vmatprep.subr.mxu0 0.0
    %236 = vmatpush1.msra.mxu0 0.0
    %237 = vmatprep.subr.mxu0 0.0
    %238 = vmatpush1.msra.mxu0 0.0
    %239 = vmatprep.subr.mxu0 0.0
    %240 = vmatpush1.msra.mxu0 0.0
    %241 = vmatprep.subr.mxu0 0.0
    %242 = vmatpush1.msra.mxu0 0.0
    %243 = vmatprep.subr.mxu0 0.0
    %244 = vmatpush1.msra.mxu0 %v206
    %245 = vmatprep.subr.mxu0 0.0
    %246 = vmatpush1.msra.mxu0 %v201
    %247 = vmatprep.subr.mxu0 0.0
    %248 = vmatpush1.msra.mxu0 %v198
    %249 = vmatprep.subr.mxu0 0.0
    %250 = vmatpush2.msra.mxu0 0.0
    %251 = vmatprep.subr.mxu0 0.0
    %252 = vmatpush2.msra.mxu0 0.0
    %253 = vmatprep.subr.mxu0 0.0
    %254 = vmatpush2.msra.mxu0 0.0
    %255 = vmatprep.subr.mxu0 0.0
    %256 = vmatpush2.msra.mxu0 0.0
    %257 = vmatprep.subr.mxu0 0.0
    %258 = vmatpush2.msra.mxu0 0.0
    %259 = vmatprep.subr.mxu0 0.0
    %260 = vmatpush2.msra.mxu0 0.0
    %261 = vmatprep.subr.mxu0 0.0
    %262 = vmatpush2.msra.mxu0 0.0
    %263 = vmatprep.subr.mxu0 0.0
    %264 = vmatpush2.msra.mxu0 0.0
    %265 = vmatprep.subr.mxu0 0.0
    %266 = vmatpush2.msra.mxu0 0.0
    %267 = vmatprep.subr.mxu0 0.0
    %268 = vmatpush2.msra.mxu0 0.0
    %269 = vmatprep.subr.mxu0 0.0
    %270 = vmatpush2.msra.mxu0 0.0
    %271 = vmatprep.subr.mxu0 0.0
    %272 = vmatpush2.msra.mxu0 0.0
    %273 = vmatprep.subr.mxu0 0.0
    %274 = vmatpush2.msra.mxu0 0.0
    %275 = vmatprep.subr.mxu0 0.0
    %276 = vmatpush2.msra.mxu0 0.0
    %277 = vmatprep.subr.mxu0 0.0
    %278 = vmatpush2.msra.mxu0 0.0
    %279 = vmatprep.subr.mxu0 0.0
    %280 = vmatpush2.msra.mxu0 0.0
    %281 = vmatprep.mubr.f32.mxu0 0.0
    %282 = vmatmul.mubr.f32.gmra.mxu0 %v215
    %v283 = vpop.f32.mrf.mxu0
    %v284 = vadd.f32 0.0, %v283
    %v285 = vpop.f32.mrf.mxu0
    %286 = vdwg.mxu0
    %v287 = vmul.f32 %v198, %v198
    %v288 = vmul.f32 %v201, %v201
    %v289 = vmul.f32 %v206, %v206
    %290 = vmatprep.subr.mxu0 0.0
    %291 = vmatpush1.msra.mxu0 0.0
    %292 = vmatprep.subr.mxu0 0.0
    %293 = vmatpush1.msra.mxu0 0.0
    %294 = vmatprep.subr.mxu0 0.0
    %295 = vmatpush1.msra.mxu0 0.0
    %296 = vmatprep.subr.mxu0 0.0
    %297 = vmatpush1.msra.mxu0 0.0
    %298 = vmatprep.subr.mxu0 0.0
    %299 = vmatpush1.msra.mxu0 0.0
    %300 = vmatprep.subr.mxu0 0.0
    %301 = vmatpush1.msra.mxu0 0.0
    %302 = vmatprep.subr.mxu0 0.0
    %303 = vmatpush1.msra.mxu0 0.0
    %304 = vmatprep.subr.mxu0 0.0
    %305 = vmatpush1.msra.mxu0 0.0
    %306 = vmatprep.subr.mxu0 0.0
    %307 = vmatpush1.msra.mxu0 0.0
    %308 = vmatprep.subr.mxu0 0.0
    %309 = vmatpush1.msra.mxu0 0.0
    %310 = vmatprep.subr.mxu0 0.0
    %311 = vmatpush1.msra.mxu0 0.0
    %312 = vmatprep.subr.mxu0 0.0
    %313 = vmatpush1.msra.mxu0 0.0
    %314 = vmatprep.subr.mxu0 0.0
    %315 = vmatpush1.msra.mxu0 0.0
    %316 = vmatprep.subr.mxu0 0.0
    %317 = vmatpush1.msra.mxu0 %v289
    %318 = vmatprep.subr.mxu0 0.0
    %319 = vmatpush1.msra.mxu0 %v288
    %320 = vmatprep.subr.mxu0 0.0
    %321 = vmatpush1.msra.mxu0 %v287
    %322 = vmatprep.subr.mxu0 0.0
    %323 = vmatpush2.msra.mxu0 0.0
    %324 = vmatprep.subr.mxu0 0.0
    %325 = vmatpush2.msra.mxu0 0.0
    %326 = vmatprep.subr.mxu0 0.0
    %327 = vmatpush2.msra.mxu0 0.0
    %328 = vmatprep.subr.mxu0 0.0
    %329 = vmatpush2.msra.mxu0 0.0
    %330 = vmatprep.subr.mxu0 0.0
    %331 = vmatpush2.msra.mxu0 0.0
    %332 = vmatprep.subr.mxu0 0.0
    %333 = vmatpush2.msra.mxu0 0.0
    %334 = vmatprep.subr.mxu0 0.0
    %335 = vmatpush2.msra.mxu0 0.0
    %336 = vmatprep.subr.mxu0 0.0
    %337 = vmatpush2.msra.mxu0 0.0
    %338 = vmatprep.subr.mxu0 0.0
    %339 = vmatpush2.msra.mxu0 0.0
    %340 = vmatprep.subr.mxu0 0.0
    %341 = vmatpush2.msra.mxu0 0.0
    %342 = vmatprep.subr.mxu0 0.0
    %343 = vmatpush2.msra.mxu0 0.0
    %344 = vmatprep.subr.mxu0 0.0
    %345 = vmatpush2.msra.mxu0 0.0
    %346 = vmatprep.subr.mxu0 0.0
    %347 = vmatpush2.msra.mxu0 0.0
    %348 = vmatprep.subr.mxu0 0.0
    %349 = vmatpush2.msra.mxu0 0.0
    %350 = vmatprep.subr.mxu0 0.0
    %351 = vmatpush2.msra.mxu0 0.0
    %352 = vmatprep.subr.mxu0 0.0
    %353 = vmatpush2.msra.mxu0 0.0
    %354 = vmatprep.mubr.f32.mxu0 0.0
    %355 = vmatmul.mubr.f32.gmra.mxu0 %v215
    %v356 = vpop.f32.mrf.mxu0
    %v357 = vadd.f32 0.0, %v356
    %v358 = vpop.f32.mrf.mxu0
    %359 = vdwg.mxu0
    %v360 = vmul.f32 %v284, 0.05
    %v361 = vmul.f32 %v357, 0.05
    %v362 = vmul.f32 %v360, %v360
    %v363 = vsub.f32 %v361, %v362
    %v364 = vmax.f32 %v363, 0.0
    %v365 = vlaneseq
    %v366 = vshrl.u32 %v365, 7
    %v367 = vsub.s32 0, %v366
    %v368 = vrot.slane %v360, %v367
    %v369 = vsub.f32 %v198, %v368
    %v370 = vsub.f32 %v201, %v368
    %v371 = vsub.f32 %v206, %v368
    %v372 = vadd.f32 %v364, 1e-05
    %v373 = vrsqrt.pop %v372
    %v374 = vlaneseq
    %v375 = vshrl.u32 %v374, 7
    %v376 = vsub.s32 0, %v375
    %v377 = vrot.slane %v373, %v376
    %v378 = vmul.f32 %v369, %v377
    %v379 = vmul.f32 %v370, %v377
    %v380 = vmul.f32 %v371, %v377
    %v382 = vlaneseq
    %v383 = vshrl.u32 %v382, 7
    %v384 = vsub.s32 0, %v383
    %v385 = vrot.slane %v211, %v384
    %v387 = vmul.f32 %v378, %v385
    %v388 = vmul.f32 %v379, %v385
    %v389 = vmul.f32 %v380, %v385
    %v391 = vlaneseq
    %v392 = vshrl.u32 %v391, 7
    %v393 = vsub.s32 0, %v392
    %v394 = vrot.slane %v212, %v393
    %v396 = vadd.f32 %v387, %v394
    %v397 = vadd.f32 %v388, %v394
    %v398 = vadd.f32 %v389, %v394
    %v399 = vmax.f32 %v396, 0.0
    %v400 = vmax.f32 %v397, 0.0
    %v401 = vmax.f32 %v398, 0.0
    %v402 = vpack.c.bf16 %v400, %v399
    %v403 = vpack.c.bf16 %v401, %v401
    %v404 = vld [vmem:[#allocation7] sm:$0xf]
    %v405 = vld [vmem:[#allocation7 + $0x4] sm:$0xf]
    %v406 = vld [vmem:[#allocation7 + $0x8] sm:$0xf]
    %v407 = vld [vmem:[#allocation7 + $0xc] sm:$0xf]
    %v408 = vld [vmem:[#allocation7 + $0x10] sm:$0xf]
    %v409 = vld [vmem:[#allocation7 + $0x14] sm:$0xf]
    %v410 = vld [vmem:[#allocation7 + $0x18] sm:$0xf]
    %v411 = vld [vmem:[#allocation7 + $0x1c] sm:$0xf]
    %v412 = vld [vmem:[#allocation7 + $0x20] sm:$0xf]
    %v413 = vld [vmem:[#allocation7 + $0x24] sm:$0xf]
    %v414 = vld [vmem:[#allocation7 + $0x28] sm:$0xf]
    %v415 = vld [vmem:[#allocation7 + $0x2c] sm:$0xf]
    %v416 = vld [vmem:[#allocation7 + $0x30] sm:$0xf]
    %v417 = vld [vmem:[#allocation7 + $0x34] sm:$0xf]
    %v418 = vld [vmem:[#allocation7 + $0x38] sm:$0xf]
    %v419 = vld [vmem:[#allocation7 + $0x3c] sm:$0xf]
    %v420 = vld [vmem:[%s6] sm:$0x1]
    %v422 = vlaneseq
    %v423 = vshrl.u32 %v422, 7
    %v424 = vsub.s32 0, %v423
    %v425 = vrot.slane %v420, %v424
    %v443 = vunpack.c.l.b16 %v404
    %v444 = vunpack.c.l.b16 %v405
    %v445 = vunpack.c.l.b16 %v406
    %v446 = vunpack.c.l.b16 %v407
    %v447 = vunpack.c.l.b16 %v408
    %v448 = vunpack.c.l.b16 %v409
    %v449 = vunpack.c.l.b16 %v410
    %v450 = vunpack.c.l.b16 %v411
    %v451 = vunpack.c.l.b16 %v412
    %v452 = vunpack.c.l.b16 %v413
    %v453 = vunpack.c.l.b16 %v414
    %v454 = vunpack.c.l.b16 %v415
    %v455 = vunpack.c.l.b16 %v416
    %v456 = vunpack.c.l.b16 %v417
    %v457 = vunpack.c.l.b16 %v418
    %v458 = vunpack.c.l.b16 %v419
    %v459 = vpack.c.b16 %v444, %v443
    %v460 = vpack.c.b16 %v446, %v445
    %v461 = vpack.c.b16 %v448, %v447
    %v462 = vpack.c.b16 %v450, %v449
    %v463 = vpack.c.b16 %v452, %v451
    %v464 = vpack.c.b16 %v454, %v453
    %v465 = vpack.c.b16 %v456, %v455
    %v466 = vpack.c.b16 %v458, %v457
    %475 = vmatprep.subr.bf16.mxu0 0
    %476 = vmatpush1.bf16.msra.mxu0 %v466
    %477 = vmatprep.subr.bf16.mxu0 0
    %478 = vmatpush1.bf16.msra.mxu0 %v465
    %479 = vmatprep.subr.bf16.mxu0 0
    %480 = vmatpush1.bf16.msra.mxu0 %v464
    %481 = vmatprep.subr.bf16.mxu0 0
    %482 = vmatpush1.bf16.msra.mxu0 %v463
    %483 = vmatprep.subr.bf16.mxu0 0
    %484 = vmatpush1.bf16.msra.mxu0 %v462
    %485 = vmatprep.subr.bf16.mxu0 0
    %486 = vmatpush1.bf16.msra.mxu0 %v461
    %487 = vmatprep.subr.bf16.mxu0 0
    %488 = vmatpush1.bf16.msra.mxu0 %v460
    %489 = vmatprep.subr.bf16.mxu0 0
    %490 = vmatpush1.bf16.msra.mxu0 %v459
    %491 = vmatprep.subr.bf16.mxu0 0
    %492 = vmatpush2.bf16.msra.mxu0 0
    %493 = vmatprep.subr.bf16.mxu0 0
    %494 = vmatpush2.bf16.msra.mxu0 0
    %495 = vmatprep.subr.bf16.mxu0 0
    %496 = vmatpush2.bf16.msra.mxu0 0
    %497 = vmatprep.subr.bf16.mxu0 0
    %498 = vmatpush2.bf16.msra.mxu0 0
    %499 = vmatprep.subr.bf16.mxu0 0
    %500 = vmatpush2.bf16.msra.mxu0 0
    %501 = vmatprep.subr.bf16.mxu0 0
    %502 = vmatpush2.bf16.msra.mxu0 0
    %503 = vmatprep.subr.bf16.mxu0 0
    %504 = vmatpush2.bf16.msra.mxu0 0
    %505 = vmatprep.subr.bf16.mxu0 0
    %506 = vmatpush2.bf16.msra.mxu0 0
    %507 = vmatprep.mubr.bf16.mxu0 0
    %508 = vmatmul.mubr.bf16.gmra.mxu0 %v402
    %v509 = vpop.f32.mrf.mxu0
    %v510 = vadd.f32 %v425, %v509
    %v511 = vpop.f32.mrf.mxu0
    %v512 = vpop.f32.mrf.mxu0
    %v513 = vadd.f32 %v425, %v512
    %v514 = vpop.f32.mrf.mxu0
    %515 = vmatprep.mubr.bf16.mxu0 0
    %516 = vmatmul.mubr.bf16.gmra.mxu0 %v403
    %v517 = vpop.f32.mrf.mxu0
    %v518 = vadd.f32 %v425, %v517
    %v519 = vpop.f32.mrf.mxu0
    %v520 = vpop.f32.mrf.mxu0
    %v521 = vpop.f32.mrf.mxu0
    %522 = vdwg.mxu0
    %v523 = vld [vmem:[%s7] sm:$0x1]
    %v524 = vld [vmem:[%s8] sm:$0x1]
    %525 = vmatprep.subr.mxu0 0.0
    %526 = vmatpush1.msra.mxu0 0.0
    %527 = vmatprep.subr.mxu0 0.0
    %528 = vmatpush1.msra.mxu0 0.0
    %529 = vmatprep.subr.mxu0 0.0
    %530 = vmatpush1.msra.mxu0 0.0
    %531 = vmatprep.subr.mxu0 0.0
    %532 = vmatpush1.msra.mxu0 0.0
    %533 = vmatprep.subr.mxu0 0.0
    %534 = vmatpush1.msra.mxu0 0.0
    %535 = vmatprep.subr.mxu0 0.0
    %536 = vmatpush1.msra.mxu0 0.0
    %537 = vmatprep.subr.mxu0 0.0
    %538 = vmatpush1.msra.mxu0 0.0
    %539 = vmatprep.subr.mxu0 0.0
    %540 = vmatpush1.msra.mxu0 0.0
    %541 = vmatprep.subr.mxu0 0.0
    %542 = vmatpush1.msra.mxu0 0.0
    %543 = vmatprep.subr.mxu0 0.0
    %544 = vmatpush1.msra.mxu0 0.0
    %545 = vmatprep.subr.mxu0 0.0
    %546 = vmatpush1.msra.mxu0 0.0
    %547 = vmatprep.subr.mxu0 0.0
    %548 = vmatpush1.msra.mxu0 0.0
    %549 = vmatprep.subr.mxu0 0.0
    %550 = vmatpush1.msra.mxu0 0.0
    %551 = vmatprep.subr.mxu0 0.0
    %552 = vmatpush1.msra.mxu0 %v518
    %553 = vmatprep.subr.mxu0 0.0
    %554 = vmatpush1.msra.mxu0 %v513
    %555 = vmatprep.subr.mxu0 0.0
    %556 = vmatpush1.msra.mxu0 %v510
    %557 = vmatprep.subr.mxu0 0.0
    %558 = vmatpush2.msra.mxu0 0.0
    %559 = vmatprep.subr.mxu0 0.0
    %560 = vmatpush2.msra.mxu0 0.0
    %561 = vmatprep.subr.mxu0 0.0
    %562 = vmatpush2.msra.mxu0 0.0
    %563 = vmatprep.subr.mxu0 0.0
    %564 = vmatpush2.msra.mxu0 0.0
    %565 = vmatprep.subr.mxu0 0.0
    %566 = vmatpush2.msra.mxu0 0.0
    %567 = vmatprep.subr.mxu0 0.0
    %568 = vmatpush2.msra.mxu0 0.0
    %569 = vmatprep.subr.mxu0 0.0
    %570 = vmatpush2.msra.mxu0 0.0
    %571 = vmatprep.subr.mxu0 0.0
    %572 = vmatpush2.msra.mxu0 0.0
    %573 = vmatprep.subr.mxu0 0.0
    %574 = vmatpush2.msra.mxu0 0.0
    %575 = vmatprep.subr.mxu0 0.0
    %576 = vmatpush2.msra.mxu0 0.0
    %577 = vmatprep.subr.mxu0 0.0
    %578 = vmatpush2.msra.mxu0 0.0
    %579 = vmatprep.subr.mxu0 0.0
    %580 = vmatpush2.msra.mxu0 0.0
    %581 = vmatprep.subr.mxu0 0.0
    %582 = vmatpush2.msra.mxu0 0.0
    %583 = vmatprep.subr.mxu0 0.0
    %584 = vmatpush2.msra.mxu0 0.0
    %585 = vmatprep.subr.mxu0 0.0
    %586 = vmatpush2.msra.mxu0 0.0
    %587 = vmatprep.subr.mxu0 0.0
    %588 = vmatpush2.msra.mxu0 0.0
    %589 = vmatprep.mubr.f32.mxu0 0.0
    %590 = vmatmul.mubr.f32.gmra.mxu0 %v215
    %v591 = vpop.f32.mrf.mxu0
    %v592 = vadd.f32 0.0, %v591
    %v593 = vpop.f32.mrf.mxu0
    %594 = vdwg.mxu0
    %v595 = vmul.f32 %v510, %v510
    %v596 = vmul.f32 %v513, %v513
    %v597 = vmul.f32 %v518, %v518
    %598 = vmatprep.subr.mxu0 0.0
    %599 = vmatpush1.msra.mxu0 0.0
    %600 = vmatprep.subr.mxu0 0.0
    %601 = vmatpush1.msra.mxu0 0.0
    %602 = vmatprep.subr.mxu0 0.0
    %603 = vmatpush1.msra.mxu0 0.0
    %604 = vmatprep.subr.mxu0 0.0
    %605 = vmatpush1.msra.mxu0 0.0
    %606 = vmatprep.subr.mxu0 0.0
    %607 = vmatpush1.msra.mxu0 0.0
    %608 = vmatprep.subr.mxu0 0.0
    %609 = vmatpush1.msra.mxu0 0.0
    %610 = vmatprep.subr.mxu0 0.0
    %611 = vmatpush1.msra.mxu0 0.0
    %612 = vmatprep.subr.mxu0 0.0
    %613 = vmatpush1.msra.mxu0 0.0
    %614 = vmatprep.subr.mxu0 0.0
    %615 = vmatpush1.msra.mxu0 0.0
    %616 = vmatprep.subr.mxu0 0.0
    %617 = vmatpush1.msra.mxu0 0.0
    %618 = vmatprep.subr.mxu0 0.0
    %619 = vmatpush1.msra.mxu0 0.0
    %620 = vmatprep.subr.mxu0 0.0
    %621 = vmatpush1.msra.mxu0 0.0
    %622 = vmatprep.subr.mxu0 0.0
    %623 = vmatpush1.msra.mxu0 0.0
    %624 = vmatprep.subr.mxu0 0.0
    %625 = vmatpush1.msra.mxu0 %v597
    %626 = vmatprep.subr.mxu0 0.0
    %627 = vmatpush1.msra.mxu0 %v596
    %628 = vmatprep.subr.mxu0 0.0
    %629 = vmatpush1.msra.mxu0 %v595
    %630 = vmatprep.subr.mxu0 0.0
    %631 = vmatpush2.msra.mxu0 0.0
    %632 = vmatprep.subr.mxu0 0.0
    %633 = vmatpush2.msra.mxu0 0.0
    %634 = vmatprep.subr.mxu0 0.0
    %635 = vmatpush2.msra.mxu0 0.0
    %636 = vmatprep.subr.mxu0 0.0
    %637 = vmatpush2.msra.mxu0 0.0
    %638 = vmatprep.subr.mxu0 0.0
    %639 = vmatpush2.msra.mxu0 0.0
    %640 = vmatprep.subr.mxu0 0.0
    %641 = vmatpush2.msra.mxu0 0.0
    %642 = vmatprep.subr.mxu0 0.0
    %643 = vmatpush2.msra.mxu0 0.0
    %644 = vmatprep.subr.mxu0 0.0
    %645 = vmatpush2.msra.mxu0 0.0
    %646 = vmatprep.subr.mxu0 0.0
    %647 = vmatpush2.msra.mxu0 0.0
    %648 = vmatprep.subr.mxu0 0.0
    %649 = vmatpush2.msra.mxu0 0.0
    %650 = vmatprep.subr.mxu0 0.0
    %651 = vmatpush2.msra.mxu0 0.0
    %652 = vmatprep.subr.mxu0 0.0
    %653 = vmatpush2.msra.mxu0 0.0
    %654 = vmatprep.subr.mxu0 0.0
    %655 = vmatpush2.msra.mxu0 0.0
    %656 = vmatprep.subr.mxu0 0.0
    %657 = vmatpush2.msra.mxu0 0.0
    %658 = vmatprep.subr.mxu0 0.0
    %659 = vmatpush2.msra.mxu0 0.0
    %660 = vmatprep.subr.mxu0 0.0
    %661 = vmatpush2.msra.mxu0 0.0
    %662 = vmatprep.mubr.f32.mxu0 0.0
    %663 = vmatmul.mubr.f32.gmra.mxu0 %v215
    %v664 = vpop.f32.mrf.mxu0
    %v665 = vadd.f32 0.0, %v664
    %v666 = vpop.f32.mrf.mxu0
    %667 = vdwg.mxu0
    %v668 = vmul.f32 %v592, 0.05
    %v669 = vmul.f32 %v665, 0.05
    %v670 = vmul.f32 %v668, %v668
    %v671 = vsub.f32 %v669, %v670
    %v672 = vmax.f32 %v671, 0.0
    %v673 = vlaneseq
    %v674 = vshrl.u32 %v673, 7
    %v675 = vsub.s32 0, %v674
    %v676 = vrot.slane %v668, %v675
    %v677 = vsub.f32 %v510, %v676
    %v678 = vsub.f32 %v513, %v676
    %v679 = vsub.f32 %v518, %v676
    %v680 = vadd.f32 %v672, 1e-05
    %v681 = vrsqrt.pop %v680
    %v682 = vlaneseq
    %v683 = vshrl.u32 %v682, 7
    %v684 = vsub.s32 0, %v683
    %v685 = vrot.slane %v681, %v684
    %v686 = vmul.f32 %v677, %v685
    %v687 = vmul.f32 %v678, %v685
    %v688 = vmul.f32 %v679, %v685
    %v690 = vlaneseq
    %v691 = vshrl.u32 %v690, 7
    %v692 = vsub.s32 0, %v691
    %v693 = vrot.slane %v523, %v692
    %v695 = vmul.f32 %v686, %v693
    %v696 = vmul.f32 %v687, %v693
    %v697 = vmul.f32 %v688, %v693
    %v699 = vlaneseq
    %v700 = vshrl.u32 %v699, 7
    %v701 = vsub.s32 0, %v700
    %v702 = vrot.slane %v524, %v701
    %v704 = vadd.f32 %v695, %v702
    %v705 = vadd.f32 %v696, %v702
    %v706 = vadd.f32 %v697, %v702
    %v707 = vmax.f32 %v704, 0.0
    %v708 = vmax.f32 %v705, 0.0
    %v709 = vmax.f32 %v706, 0.0
    %710 = vst [vmem:[#allocation8] sm:$0xff] %v707
    %711 = vst [vmem:[#allocation8 + $0x8] sm:$0xff] %v708
    %712 = vst [vmem:[#allocation8 + $0x10] sm:$0xff] %v709
    // Predicated region
    $region54: #{tpu_custom_call.1} parent=1 // pred_check
      _
    $region55: #{tpu_custom_call.1} parent=1 // pred_check_branch
      %714 = sbr.rel (0) target = $region57
    $region56: #{tpu_custom_call.1} parent=1 // pred_region
      %s716 = ssub.s32 384, 384
      %717 = vsyncadd [#allocation4], %s716
      %s718 = sshll.u32 [#allocation8], 4
      %s719 = int_to_ptr.vmem [resolvable:$true] %s718
      %724 = dma.vmem_to_hbm [thread:$0]  %s719, 384, %s10, [#allocation4], 128, 128, 8
    $region57: #{tpu_custom_call.1} parent=1 // pred_fallthru
      _
    // Predicated region
    $region58: #{tpu_custom_call.1} parent=1 // pred_check
      _
    $region59: #{tpu_custom_call.1} parent=1 // pred_check_branch
      %726 = sbr.rel (0) target = $region61
    $region60: #{tpu_custom_call.1} parent=1 // pred_region
      %727 = dma.done [#allocation4], 384
    $region61: #{tpu_custom_call.1} parent=1 // pred_fallthru
      _
    %728 = vsyncpa [#allocation3], 1
    %729 = vsyncpa [#allocation6], 1
    %730 = vsyncpa [#allocation4], 1

</llo_original>
